<compile_context>
chip_gen: v5e
topology: v5e:2x2
jax: 0.10.0
libtpu: 0.0.40
codegen_flags: <defaults>
</compile_context>

<pallas_src>
import numpy as np
import jax
import jax.numpy as jnp
from jax import lax
from jax.experimental import pallas as pl
from jax.experimental.pallas import tpu as pltpu


# ---------------------------------------------------------------------------
# Kernel: out = x @ w + b, whole arrays in VMEM, single invocation
# ---------------------------------------------------------------------------
def _vig_linear_kernel(x_ref, w_ref, b_ref, o_ref):
    # x_ref: (B, 320), w_ref: (320, 34), b_ref: (1, 34), o_ref: (B, 34)
    o_ref[...] = (
        jnp.dot(x_ref[...], w_ref[...], preferred_element_type=jnp.float32)
        + b_ref[...]
    ).astype(o_ref.dtype)


def vig_linear(x, w, b):
    """Forward of VIG_Linear: flatten(x, 1) @ w + b.

    w is stored as (in_features, out_features) (i.e. torch weight transposed).
    """
    B = x.shape[0]
    x2 = x.reshape(B, -1)                       # torch.flatten(x, 1)
    K, N = w.shape
    assert x2.shape[1] == K, (x2.shape, w.shape)

    vmem = pl.BlockSpec(memory_space=pltpu.MemorySpace.VMEM)
    return pl.pallas_call(
        _vig_linear_kernel,
        out_shape=jax.ShapeDtypeStruct((B, N), x2.dtype),
        in_specs=[vmem, vmem, vmem],            # all operands fully resident in VMEM
        out_specs=vmem,
    )(x2, w, b.reshape(1, N))


# ---------------------------------------------------------------------------
# Plain-JAX reference
# ---------------------------------------------------------------------------
def reference_forward(x, w, b):
    x2 = x.reshape(x.shape[0], -1)
    return jnp.dot(x2, w, precision=lax.Precision.HIGHEST) + b


# ---------------------------------------------------------------------------
if __name__ == "__main__":
    B = 2
    in_features = 320          # flatten(x, 1) must yield 320 features
    out_features = 17 * 2      # nn.Linear(320, 34)

    key = jax.random.PRNGKey(0)
    kx, kw, kb = jax.random.split(key, 3)

    # (B, 4, 8, 10) -> flatten -> (B, 320), consistent with the module.
    x = jax.random.normal(kx, (B, 4, 8, 10), jnp.float32)
    # torch stores the Linear weight as (out, in); we keep the (in, out) layout
    # the kernel consumes directly (mathematically identical forward).
    w = jax.random.normal(kw, (in_features, out_features), jnp.float32) / np.sqrt(in_features)
    b = 0.01 * jax.random.normal(kb, (out_features,), jnp.float32)

    fwd = jax.jit(lambda xx: vig_linear(xx, w, b))
    out = jax.block_until_ready(fwd(x))

    assert out.shape == (B, out_features), out.shape
    assert bool(jnp.all(jnp.isfinite(out)))

    ref = jax.block_until_ready(reference_forward(x, w, b))
    max_diff = float(jnp.max(jnp.abs(out - ref)))
    if not np.allclose(np.asarray(out), np.asarray(ref), rtol=1e-2, atol=1e-2):
        raise AssertionError(f"Pallas output mismatch vs reference, max|diff|={max_diff}")

    print("KERNEL_OK")
</pallas_src>

<mosaic_0001>
module attributes {stable_mosaic.version = 11 : i64} {
  func.func @_vig_linear_kernel(%arg0: memref<2x320xf32, #tpu.memory_space<vmem>>, %arg1: memref<320x34xf32, #tpu.memory_space<vmem>>, %arg2: memref<1x34xf32, #tpu.memory_space<vmem>>, %arg3: memref<2x34xf32, #tpu.memory_space<vmem>>) attributes {dimension_semantics = [], scalar_prefetch = 0 : i64, scratch_operands = 0 : i64, tpu.core_type = #tpu.core_type<tc>} {
    %c0 = arith.constant 0 : index
    %c0_0 = arith.constant 0 : index
    %0 = vector.load %arg0[%c0, %c0_0] : memref<2x320xf32, #tpu.memory_space<vmem>>, vector<2x320xf32>
    %c0_1 = arith.constant 0 : index
    %c0_2 = arith.constant 0 : index
    %1 = vector.load %arg1[%c0_1, %c0_2] : memref<320x34xf32, #tpu.memory_space<vmem>>, vector<320x34xf32>
    %cst = arith.constant dense<0.000000e+00> : vector<2x34xf32>
    %2 = tpu.matmul %0, %1, %cst {dimension_numbers = #tpu.dot_dimension_numbers<[1], [0], [0], [1], [0, 0, 1, 1], [], []>} : vector<2x320xf32>, vector<320x34xf32>, vector<2x34xf32> -> vector<2x34xf32>
    %c0_3 = arith.constant 0 : index
    %c0_4 = arith.constant 0 : index
    %3 = vector.load %arg2[%c0_3, %c0_4] : memref<1x34xf32, #tpu.memory_space<vmem>>, vector<1x34xf32>
    %4 = vector.broadcast %3 : vector<1x34xf32> to vector<2x34xf32>
    %5 = arith.addf %2, %4 : vector<2x34xf32>
    %c0_5 = arith.constant 0 : index
    %c0_6 = arith.constant 0 : index
    %6 = vector.load %arg3[%c0_5, %c0_6] : memref<2x34xf32, #tpu.memory_space<vmem>>, vector<2x34xf32>
    tpu.vector_store %arg3[%c0_5, %c0_6], %5 {strides = array<i32>} : memref<2x34xf32, #tpu.memory_space<vmem>>, vector<2x34xf32>,
    return
  }
}

</mosaic_0001>

<llo_original>
// kernel: _lambda_.1
$region0: #{_lambda_.1}
  #allocation0 [shape = 'u32[]', space=smem, size = 0x4, offset = 0x4, fixed_abs, tag = 'smem constant byte address 0x4 - core index']
  #allocation1 [shape = 'u32[72,128]{1,0:T(1,128)}', space=vmem, size = 0x9000, scoped, tag = 'internal scratch']
  %s0 = inlined_call_operand.vmem [shape: f32[2,320], index: 0, kind: input, shape index: {}]
  %s1 = inlined_call_operand.hbm [shape: f32[320,34], index: 1, kind: input, shape index: {}]
  %s2 = inlined_call_operand.vmem [shape: f32[1,34], index: 2, kind: input, shape index: {}]
  %s3 = inlined_call_operand.hbm [shape: f32[2,34], index: 3, kind: output, shape index: {}]
  %s4 = sld [smem:[#allocation0]]
  $region26: #{_lambda_.1} parent=0
    _
  %s6 = ssub.s32 1, %s4
  %s7 = scalar_select 0, %s6, %s4
  $region1: #{_lambda_.1} parent=0
    #allocation2 [shape = 'u8[163840]{0}', space=vmem, size = 0x28000, scoped, tag = 'input window, operand 1, single buffered']
    #allocation3 [shape = 's32[1]{0}', space=sflag, size = 0x4, scoped, tag = 'scoped memory for _lambda_.1']
    #allocation4 [shape = 's32[1]{0}', space=sflag, size = 0x4, scoped, tag = 'scoped memory for _lambda_.1']
    #allocation5 [shape = 'u8[1024]{0}', space=vmem, size = 0x400, scoped, tag = 'output window, operand 0, single buffered']
    %8 = vsyncpa [#allocation3], 0
    %9 = vsyncpa [#allocation4], 0
    // Predicated region
    $region2: #{_lambda_.1} parent=1 // pred_check
      _
    $region3: #{_lambda_.1} parent=1 // pred_check_branch
      %11 = sbr.rel (0) target = $region5
    $region4: #{_lambda_.1} parent=1 // pred_region
      _
    $region5: #{_lambda_.1} parent=1 // pred_fallthru
      _
    // Predicated region
    $region6: #{_lambda_.1} parent=1 // pred_check
      _
    $region7: #{_lambda_.1} parent=1 // pred_check_branch
      %13 = sbr.rel (0) target = $region9
    $region8: #{_lambda_.1} parent=1 // pred_region
      %15 = vsyncadd [#allocation3], 0
      %s16 = sshll.u32 %s1, 4
      %s17 = int_to_ptr.hbm [resolvable:$true] %s16
      %s18 = sshll.u32 [#allocation2], 4
      %s19 = int_to_ptr.vmem [resolvable:$true] %s18
      %24 = dma.hbm_to_vmem [thread:$0]  %s17, 5120, %s19, [#allocation3], 128, 128, 8
    $region9: #{_lambda_.1} parent=1 // pred_fallthru
      _
    // Predicated region
    $region10: #{_lambda_.1} parent=1 // pred_check
      _
    $region11: #{_lambda_.1} parent=1 // pred_check_branch
      %26 = sbr.rel (0) target = $region13
    $region12: #{_lambda_.1} parent=1 // pred_region
      _
    $region13: #{_lambda_.1} parent=1 // pred_fallthru
      _
    // Predicated region
    $region14: #{_lambda_.1} parent=1 // pred_check
      _
    $region15: #{_lambda_.1} parent=1 // pred_check_branch
      %28 = sbr.rel (0) target = $region17
    $region16: #{_lambda_.1} parent=1 // pred_region
      %30 = dma.done [#allocation3], 5120
    $region17: #{_lambda_.1} parent=1 // pred_fallthru
      _
    %v31 = vld [vmem:[%s0] sm:$0x3f]
    %v32 = vld [vmem:[#allocation2] sm:$0xff]
    %v33 = vld [vmem:[#allocation2 + $0x8] sm:$0xff]
    %v34 = vld [vmem:[#allocation2 + $0x10] sm:$0xff]
    %v35 = vld [vmem:[#allocation2 + $0x18] sm:$0xff]
    %v36 = vld [vmem:[#allocation2 + $0x20] sm:$0xff]
    %v37 = vld [vmem:[#allocation2 + $0x28] sm:$0xff]
    %v38 = vld [vmem:[#allocation2 + $0x30] sm:$0xff]
    %v39 = vld [vmem:[#allocation2 + $0x38] sm:$0xff]
    %v40 = vld [vmem:[#allocation2 + $0x40] sm:$0xff]
    %v41 = vld [vmem:[#allocation2 + $0x48] sm:$0xff]
    %v42 = vld [vmem:[#allocation2 + $0x50] sm:$0xff]
    %v43 = vld [vmem:[#allocation2 + $0x58] sm:$0xff]
    %v44 = vld [vmem:[#allocation2 + $0x60] sm:$0xff]
    %v45 = vld [vmem:[#allocation2 + $0x68] sm:$0xff]
    %v46 = vld [vmem:[#allocation2 + $0x70] sm:$0xff]
    %v47 = vld [vmem:[#allocation2 + $0x78] sm:$0xff]
    %v48 = vld [vmem:[#allocation2 + $0x80] sm:$0xff]
    %v49 = vld [vmem:[#allocation2 + $0x88] sm:$0xff]
    %v50 = vld [vmem:[#allocation2 + $0x90] sm:$0xff]
    %v51 = vld [vmem:[#allocation2 + $0x98] sm:$0xff]
    %v52 = vld [vmem:[#allocation2 + $0xa0] sm:$0xff]
    %v53 = vld [vmem:[#allocation2 + $0xa8] sm:$0xff]
    %v54 = vld [vmem:[#allocation2 + $0xb0] sm:$0xff]
    %v55 = vld [vmem:[#allocation2 + $0xb8] sm:$0xff]
    %v56 = vld [vmem:[#allocation2 + $0xc0] sm:$0xff]
    %v57 = vld [vmem:[#allocation2 + $0xc8] sm:$0xff]
    %v58 = vld [vmem:[#allocation2 + $0xd0] sm:$0xff]
    %v59 = vld [vmem:[#allocation2 + $0xd8] sm:$0xff]
    %v60 = vld [vmem:[#allocation2 + $0xe0] sm:$0xff]
    %v61 = vld [vmem:[#allocation2 + $0xe8] sm:$0xff]
    %v62 = vld [vmem:[#allocation2 + $0xf0] sm:$0xff]
    %v63 = vld [vmem:[#allocation2 + $0xf8] sm:$0xff]
    %v64 = vld [vmem:[#allocation2 + $0x100] sm:$0xff]
    %v65 = vld [vmem:[#allocation2 + $0x108] sm:$0xff]
    %v66 = vld [vmem:[#allocation2 + $0x110] sm:$0xff]
    %v67 = vld [vmem:[#allocation2 + $0x118] sm:$0xff]
    %v68 = vld [vmem:[#allocation2 + $0x120] sm:$0xff]
    %v69 = vld [vmem:[#allocation2 + $0x128] sm:$0xff]
    %v70 = vld [vmem:[#allocation2 + $0x130] sm:$0xff]
    %v71 = vld [vmem:[#allocation2 + $0x138] sm:$0xff]
    %v72 = vld [vmem:[%s2] sm:$0x1]
    %v74 = vperm.slane %v72, 0
    %77 = vst [vmem:[#allocation1] ss:$4 sm:$0xff] %v31
    %v78 = vld.sshfl [vmem:[#allocation1] sm:$0xff pattern:$0x73625140]
    %v79 = vld.sshfl [vmem:[#allocation1 + $0x8] sm:$0xff pattern:$0x73625140]
    %v80 = vld.sshfl [vmem:[#allocation1 + $0x10] sm:$0xff pattern:$0x73625140]
    %vm83 = vcmask 523264
    %v84 = vsel %vm83, %v80, 0
    %86 = vmatpush.msra.mxu0 %v47
    %87 = vmatpush.msra.mxu0 %v46
    %88 = vmatpush.msra.mxu0 %v45
    %89 = vmatpush.msra.mxu0 %v44
    %90 = vmatpush.msra.mxu0 %v43
    %91 = vmatpush.msra.mxu0 %v42
    %92 = vmatpush.msra.mxu0 %v41
    %93 = vmatpush.msra.mxu0 %v40
    %94 = vmatpush.msra.mxu0 %v39
    %95 = vmatpush.msra.mxu0 %v38
    %96 = vmatpush.msra.mxu0 %v37
    %97 = vmatpush.msra.mxu0 %v36
    %98 = vmatpush.msra.mxu0 %v35
    %99 = vmatpush.msra.mxu0 %v34
    %100 = vmatpush.msra.mxu0 %v33
    %101 = vmatpush.msra.mxu0 %v32
    %102 = vmatmul.f32.gmra.mxu0 %v78
    %v103 = vpop.f32.mrf.mxu0
    %v104 = vadd.f32 %v74, %v103
    %105 = vdwg.mxu0
    %106 = vmatpush.msra.mxu0 %v63
    %107 = vmatpush.msra.mxu0 %v62
    %108 = vmatpush.msra.mxu0 %v61
    %109 = vmatpush.msra.mxu0 %v60
    %110 = vmatpush.msra.mxu0 %v59
    %111 = vmatpush.msra.mxu0 %v58
    %112 = vmatpush.msra.mxu0 %v57
    %113 = vmatpush.msra.mxu0 %v56
    %114 = vmatpush.msra.mxu0 %v55
    %115 = vmatpush.msra.mxu0 %v54
    %116 = vmatpush.msra.mxu0 %v53
    %117 = vmatpush.msra.mxu0 %v52
    %118 = vmatpush.msra.mxu0 %v51
    %119 = vmatpush.msra.mxu0 %v50
    %120 = vmatpush.msra.mxu0 %v49
    %121 = vmatpush.msra.mxu0 %v48
    %122 = vmatmul.f32.gmra.mxu0 %v79
    %v123 = vpop.f32.mrf.mxu0
    %v124 = vadd.f32 %v104, %v123
    %125 = vdwg.mxu0
    %126 = vmatpush.msra.mxu0 0.0
    %127 = vmatpush.msra.mxu0 0.0
    %128 = vmatpush.msra.mxu0 0.0
    %129 = vmatpush.msra.mxu0 0.0
    %130 = vmatpush.msra.mxu0 0.0
    %131 = vmatpush.msra.mxu0 0.0
    %132 = vmatpush.msra.mxu0 0.0
    %133 = vmatpush.msra.mxu0 0.0
    %134 = vmatpush.msra.mxu0 %v71
    %135 = vmatpush.msra.mxu0 %v70
    %136 = vmatpush.msra.mxu0 %v69
    %137 = vmatpush.msra.mxu0 %v68
    %138 = vmatpush.msra.mxu0 %v67
    %139 = vmatpush.msra.mxu0 %v66
    %140 = vmatpush.msra.mxu0 %v65
    %141 = vmatpush.msra.mxu0 %v64
    %142 = vmatmul.f32.gmra.mxu0 %v84
    %v143 = vpop.f32.mrf.mxu0
    %v144 = vadd.f32 %v124, %v143
    %145 = vdwg.mxu0
    %vm146 = vcmask 271360
    %147 = vst.msk [vmem:[#allocation5] sm:$0x3] %vm146, %v144
    // Predicated region
    $region18: #{_lambda_.1} parent=1 // pred_check
      _
    $region19: #{_lambda_.1} parent=1 // pred_check_branch
      %149 = sbr.rel (0) target = $region21
    $region20: #{_lambda_.1} parent=1 // pred_region
      %151 = vsyncadd [#allocation4], 0
      %s153 = sshll.u32 [#allocation5], 4
      %s154 = int_to_ptr.vmem [resolvable:$true] %s153
      %s155 = sshll.u32 %s3, 4
      %s156 = int_to_ptr.hbm [resolvable:$true] %s155
      %158 = dma.vmem_to_hbm [thread:$0]  %s154, 32, %s156, [#allocation4]
    $region21: #{_lambda_.1} parent=1 // pred_fallthru
      _
    // Predicated region
    $region22: #{_lambda_.1} parent=1 // pred_check
      _
    $region23: #{_lambda_.1} parent=1 // pred_check_branch
      %160 = sbr.rel (0) target = $region25
    $region24: #{_lambda_.1} parent=1 // pred_region
      %162 = dma.done [#allocation4], 32
    $region25: #{_lambda_.1} parent=1 // pred_fallthru
      _
    %163 = vsyncpa [#allocation3], 1
    %164 = vsyncpa [#allocation4], 1

</llo_original>
